<compile_context>
chip_gen: v6e
topology: v6e:2x2x1
jax: 0.10.0
libtpu: 0.0.40
codegen_flags: <defaults>
</compile_context>

<pallas_src>
import functools
import math

import numpy as np
import jax
import jax.numpy as jnp
from jax.experimental import pallas as pl
from jax.experimental.pallas import tpu as pltpu

# ---------------- configuration consistent with STRFNet.__init__ (scaled down) -----
SAMPLE_RATE = 16000
N_FFT = 64
HOP = 32                      # = int(step * sample_rate) scaled down
N_MELS = 16                   # n_mels
NUM_GABOR_FILTERS = 8         # num_gabor_filters
KERNEL_SIZE = (5, 7)          # (freq, time) Gabor kernel, odd so padding preserves shape
STRIDE = (1, 1)
TOP_DB = 80.0
AMIN = 1e-10
N_FREQ = N_FFT // 2 + 1
DFT_COLS = 128                # lane-dense container holding [cos | sin] (n_freq each half)


# ------------------------------ fused Pallas kernel --------------------------------
def _strfnet_fused_kernel(frames_ref, dftw_ref, melmat_ref, rbig_ref, o_ref, *,
                          batch, n_frames, n_mels, k1):
    """frames -> power spec -> mel -> dB -> Gabor conv; everything stays on-chip."""
    B, T = batch, n_frames
    pw = (k1 - 1) // 2

    # --- windowed DFT (re|im packed on 128 lanes), whole batch in one bf16 matmul --
    proj = jnp.dot(frames_ref[...], dftw_ref[...],
                   preferred_element_type=jnp.float32)            # (B*T, 128) f32
    power = proj * proj                                           # re^2 / im^2 slots

    # --- mel projection: duplicated filterbank sums re^2 + im^2 in one f32 matmul --
    mel = jnp.dot(power, melmat_ref[...],
                  preferred_element_type=jnp.float32)             # (B*T, n_mels)

    # --- AmplitudeToDB('power', top_db=80); db_multiplier = log10(1.0) = 0.
    #     The global max (== x_db.max().item() in the reference) is reduced on the
    #     pre-log clamped power so the XLU reduce overlaps the EUP logs. -----------
    c = 10.0 / math.log(10.0)
    mel_c = jnp.maximum(mel, AMIN)
    gmax = jnp.max(mel_c)                                         # XLU reduce (pre-log)
    x_db = c * jnp.log(mel_c)                                     # EUP
    x_db = jnp.maximum(x_db, c * jnp.log(gmax) - TOP_DB)          # clamp to max - top_db

    # --- Gabor STRF conv as ONE MXU matmul (im2col over the time axis):
    #     each time shift dt is a sublane roll + per-batch zero-padding mask,
    #     pieces are concatenated on lanes -> (B*T, k1*n_mels), multiplied once
    #     against the pre-stacked bf16 weight matrix (k1*n_mels, 2F*n_mels).
    #     out[b*T + t, o*n_mels + m] == conv_out[b, o, m, t]  (lane-dense, 256 wide).
    t_idx = jax.lax.broadcasted_iota(jnp.int32, (B * T, n_mels), 0) % T
    pieces = []
    for dt in range(k1):
        s = dt - pw                                               # time offset
        if s == 0:
            pieces.append(x_db)
        else:
            rolled = pltpu.roll(x_db, shift=(-s) % (B * T), axis=0)   # rolled[r]=x_db[r+s]
            valid = jnp.logical_and(t_idx + s >= 0, t_idx + s < T)    # per-batch zero pad
            pieces.append(jnp.where(valid, rolled, jnp.zeros_like(rolled)))
    stacked = jnp.concatenate(pieces, axis=-1)                    # (B*T, k1*n_mels)
    o_ref[...] = jnp.dot(stacked.astype(jnp.bfloat16), rbig_ref[...],
                         preferred_element_type=jnp.float32)      # (B*T, 2F*n_mels)


def strfnet_fused_pallas(frames, dftw, melmat, rbig, *, batch, n_frames,
                         n_mels, o2, k1):
    kernel = functools.partial(_strfnet_fused_kernel, batch=batch, n_frames=n_frames,
                               n_mels=n_mels, k1=k1)
    return pl.pallas_call(
        kernel,
        out_shape=jax.ShapeDtypeStruct((batch * n_frames, o2 * n_mels), jnp.float32),
        in_specs=[pl.BlockSpec(memory_space=pltpu.MemorySpace.VMEM)] * 4,
        out_specs=pl.BlockSpec(memory_space=pltpu.MemorySpace.VMEM),
    )(frames, dftw, melmat, rbig)


# ------------------------------ parameter construction -----------------------------
def init_gabor_params(out_channels, in_channels, rng):
    """Same distributions as STRFConv2d.__init__ (classic_freq_unit_init=True)."""
    return dict(
        theta=rng.vonmises(0, 0, (out_channels, in_channels)),       # unused in fwd
        gamma=rng.vonmises(0, 0, (out_channels, in_channels)),
        psi=rng.vonmises(0, 0, (out_channels, in_channels)),         # unused in fwd
        freq=np.pi / 2 * 1.41 ** (-rng.uniform(0, 5, (out_channels, in_channels))),
        sigma_x=2 * 1.41 ** rng.uniform(0, 6, (out_channels, in_channels)),
        sigma_y=2 * 1.41 ** rng.uniform(0, 6, (out_channels, in_channels)),
    )


def build_gabor_weights(p, kernel_size, use_real):
    """Replicates the weight construction loop in STRFConv2d.forward."""
    k0, k1 = kernel_size
    f0 = math.ceil(k0 / 2)
    t0 = math.ceil(k1 / 2)
    fg = np.linspace(-f0 + 1, f0, k0)
    tg = np.linspace(-t0 + 1, t0, k1)
    f, t = np.meshgrid(fg, tg, indexing="ij")          # (k0, k1) like torch.meshgrid
    O, I = p["freq"].shape
    W = np.zeros((O, I, k0, k1), np.float32)
    for i in range(O):
        for j in range(I):
            sx, sy = p["sigma_x"][i, j], p["sigma_y"][i, j]
            fr, gm = p["freq"][i, j], p["gamma"][i, j]
            rot_gamma = t * np.cos(gm) + f * np.sin(gm)
            g = np.exp(-0.5 * (f ** 2 / (sx + 0.001) ** 2 + t ** 2 / (sy + 0.001) ** 2))
            g = g * (np.cos(fr * rot_gamma) if use_real else np.sin(fr * rot_gamma))
            g = g / (2 * np.pi * sx * sy)
            W[i, j] = g
    return W


def make_mel_fb(n_mels, n_freq, sr, n_fft):
    def hz2mel(f):
        return 2595.0 * np.log10(1.0 + f / 700.0)

    def mel2hz(m):
        return 700.0 * (10.0 ** (m / 2595.0) - 1.0)

    hz = mel2hz(np.linspace(hz2mel(0.0), hz2mel(sr / 2.0), n_mels + 2))
    freqs = np.arange(n_freq) * sr / n_fft
    fb = np.zeros((n_mels, n_freq), np.float32)
    for m in range(n_mels):
        lo, c, hi = hz[m], hz[m + 1], hz[m + 2]
        up = (freqs - lo) / max(c - lo, 1e-8)
        down = (hi - freqs) / max(hi - c, 1e-8)
        fb[m] = np.maximum(0.0, np.minimum(up, down))
    return fb


def build_dft_and_mel(n_fft, n_freq, n_mels, sr):
    """Window-folded, lane-dense DFT matrix and duplicated mel filterbank matrix."""
    n = np.arange(n_fft)
    k = np.arange(n_freq)
    ang = 2.0 * np.pi * np.outer(n, k) / n_fft                    # (n_fft, n_freq)
    window = 0.5 - 0.5 * np.cos(2.0 * np.pi * n / n_fft)          # periodic Hann
    half = DFT_COLS // 2
    dftw = np.zeros((n_fft, DFT_COLS), np.float32)
    dftw[:, :n_freq] = window[:, None] * np.cos(ang)              # real part
    dftw[:, half:half + n_freq] = -window[:, None] * np.sin(ang)  # imag part
    fb = make_mel_fb(n_mels, n_freq, sr, n_fft)                   # (n_mels, n_freq)
    melmat = np.zeros((DFT_COLS, n_mels), np.float32)
    melmat[:n_freq, :] = fb.T
    melmat[half:half + n_freq, :] = fb.T                          # sums re^2 + im^2
    return dftw, melmat


def build_conv_rhs_stacked(weight, n_mels):
    """Fold the (O2,1,k0,k1) Gabor weights + frequency padding into ONE stacked matrix.

    rbig[dt*n_mels + mp, o*n_mels + m] = weight[o, 0, mp - m + k0//2, dt] (0 elsewhere):
    conv_out[b, o, m, t] = (im2col[b*T+t, :] @ rbig)[o*n_mels + m], where
    im2col[b*T+t, dt*n_mels + mp] = dB-mel[b, mp, t + dt - (k1-1)//2] (zero-padded time).
    """
    O2, _, k0, k1 = weight.shape
    ph = k0 // 2
    rbig = np.zeros((k1 * n_mels, O2 * n_mels), np.float32)
    for dt in range(k1):
        for o in range(O2):
            for dh in range(k0):
                for m in range(n_mels):
                    mp = m + dh - ph
                    if 0 <= mp < n_mels:
                        rbig[dt * n_mels + mp, o * n_mels + m] = weight[o, 0, dh, dt]
    return rbig


# ------------------------------ full forward pass -----------------------------------
def strfnet_forward(waveforms, params):
    """waveforms: (B, n_samples, 1) -> (B, num_gabor_filters, 2*n_mels, n_frames)."""
    B, N, _ = waveforms.shape
    x = waveforms[:, :, 0].astype(jnp.float32)                  # (B, N)

    # waveform instance norm (F.instance_norm, no affine, eps=1e-5)
    mean = jnp.mean(x, axis=1, keepdims=True)
    var = jnp.mean((x - mean) ** 2, axis=1, keepdims=True)
    x = (x - mean) * jax.lax.rsqrt(var + 1e-5)

    # framing (center=False); the Hann window is folded into the DFT matrix
    T = 1 + (N - N_FFT) // HOP
    idx = np.arange(T)[:, None] * HOP + np.arange(N_FFT)[None, :]
    frames = x[:, idx].reshape(B * T, N_FFT).astype(jnp.bfloat16)  # (B*T, n_fft)

    o2 = 2 * NUM_GABOR_FILTERS

    # single fused Pallas kernel: mel power spec + dB + Gabor conv ('concat' mode)
    res = strfnet_fused_pallas(frames, params["dftw"], params["melmat"],
                               params["rbig"], batch=B, n_frames=T, n_mels=N_MELS,
                               o2=o2, k1=KERNEL_SIZE[1])        # (B*T, 2F*n_mels)

    # res[b*T + t, o*n_mels + m] == conv_out[b, o, m, t]  ->  torch NCHW layout
    res = res.reshape(B, T, o2, N_MELS)
    conv = jnp.transpose(res, (0, 2, 3, 1))                     # (B, 2F, n_mels, T)

    # Dropout2d(p=0.0) -> identity; 'concat' reshape; pre_lstm_layer_bool=False
    return conv.reshape(B, NUM_GABOR_FILTERS, 2 * (N_MELS // STRIDE[0]), T)


# ------------------------------------ main ------------------------------------------
if __name__ == "__main__":
    B = 2
    T = 16
    N_SAMPLES = N_FFT + HOP * (T - 1)                           # 544

    key = jax.random.PRNGKey(0)
    waveforms = jax.random.normal(key, (B, N_SAMPLES, 1), dtype=jnp.float32)

    # deterministic parameter init (same shapes/distributions as STRFConv2d.__init__)
    rng = np.random.default_rng(0)
    gparams = init_gabor_params(NUM_GABOR_FILTERS, 1, rng)
    w_real = build_gabor_weights(gparams, KERNEL_SIZE, use_real=True)
    w_imag = build_gabor_weights(gparams, KERNEL_SIZE, use_real=False)
    gabor_weight = np.concatenate([w_real, w_imag], axis=0)     # (2F, 1, k0, k1)

    dftw, melmat = build_dft_and_mel(N_FFT, N_FREQ, N_MELS, SAMPLE_RATE)
    rbig = build_conv_rhs_stacked(gabor_weight, N_MELS)         # (k1*n_mels, 2F*n_mels)

    params = dict(
        dftw=jnp.asarray(dftw, dtype=jnp.bfloat16),             # (n_fft, 128)
        melmat=jnp.asarray(melmat, dtype=jnp.float32),          # (128, n_mels)
        rbig=jnp.asarray(rbig, dtype=jnp.bfloat16),             # (112, 2F*n_mels)
    )

    out = jax.jit(lambda w: strfnet_forward(w, params))(waveforms)
    out = jax.block_until_ready(out)

    assert out.shape == (B, NUM_GABOR_FILTERS, 2 * N_MELS, T), out.shape
    assert bool(np.all(np.isfinite(np.asarray(out))))
    print("KERNEL_OK")
</pallas_src>

<mosaic_0001>
module attributes {stable_mosaic.version = 11 : i64} {
  func.func @_strfnet_fused_kernel(%arg0: memref<32x64xbf16, #tpu.memory_space<vmem>>, %arg1: memref<64x128xbf16, #tpu.memory_space<vmem>>, %arg2: memref<128x16xf32, #tpu.memory_space<vmem>>, %arg3: memref<112x256xbf16, #tpu.memory_space<vmem>>, %arg4: memref<32x256xf32, #tpu.memory_space<vmem>>) attributes {dimension_semantics = [], scalar_prefetch = 0 : i64, scratch_operands = 0 : i64, tpu.core_type = #tpu.core_type<tc>} {
    %c0 = arith.constant 0 : index
    %c0_0 = arith.constant 0 : index
    %0 = vector.load %arg0[%c0, %c0_0] : memref<32x64xbf16, #tpu.memory_space<vmem>>, vector<32x64xbf16>
    %c0_1 = arith.constant 0 : index
    %c0_2 = arith.constant 0 : index
    %1 = vector.load %arg1[%c0_1, %c0_2] : memref<64x128xbf16, #tpu.memory_space<vmem>>, vector<64x128xbf16>
    %cst = arith.constant dense<0.000000e+00> : vector<32x128xf32>
    %2 = tpu.matmul %0, %1, %cst {dimension_numbers = #tpu.dot_dimension_numbers<[1], [0], [0], [1], [0, 0, 1, 1], [], []>} : vector<32x64xbf16>, vector<64x128xbf16>, vector<32x128xf32> -> vector<32x128xf32>
    %3 = arith.mulf %2, %2 : vector<32x128xf32>
    %c0_3 = arith.constant 0 : index
    %c0_4 = arith.constant 0 : index
    %4 = vector.load %arg2[%c0_3, %c0_4] : memref<128x16xf32, #tpu.memory_space<vmem>>, vector<128x16xf32>
    %cst_5 = arith.constant dense<0.000000e+00> : vector<32x16xf32>
    %5 = tpu.matmul %3, %4, %cst_5 {dimension_numbers = #tpu.dot_dimension_numbers<[1], [0], [0], [1], [0, 0, 1, 1], [], []>} : vector<32x128xf32>, vector<128x16xf32>, vector<32x16xf32> -> vector<32x16xf32>
    %cst_6 = arith.constant 1.000000e-10 : f32
    %6 = vector.broadcast %cst_6 : f32 to vector<32x16xf32>
    %7 = arith.maximumf %5, %6 : vector<32x16xf32>
    %8 = vector.shape_cast %7 : vector<32x16xf32> to vector<1x32x16xf32>
    %cst_7 = arith.constant dense<0xFF800000> : vector<1xf32>
    %9 = vector.multi_reduction <maximumf>, %8, %cst_7 [1, 2] : vector<1x32x16xf32> to vector<1xf32>
    %10 = vector.shape_cast %9 : vector<1xf32> to vector<1x1x1xf32>
    %11 = vector.extract %10[0, 0, 0] : f32 from vector<1x1x1xf32>
    %12 = math.log %7 : vector<32x16xf32>
    %cst_8 = arith.constant 4.34294462 : f32
    %13 = vector.broadcast %cst_8 : f32 to vector<32x16xf32>
    %14 = arith.mulf %13, %12 : vector<32x16xf32>
    %15 = math.log %11 : f32
    %cst_9 = arith.constant 4.34294462 : f32
    %16 = arith.mulf %cst_9, %15 : f32
    %cst_10 = arith.constant 8.000000e+01 : f32
    %17 = arith.subf %16, %cst_10 : f32
    %18 = vector.broadcast %17 : f32 to vector<32x16xf32>
    %19 = arith.maximumf %14, %18 : vector<32x16xf32>
    %20 = tpu.iota {dimensions = array<i32: 0>} : vector<32x16xi32>
    %c16_i32 = arith.constant 16 : i32
    %c0_i32 = arith.constant 0 : i32
    %21 = arith.cmpi eq, %c16_i32, %c0_i32 : i32
    %c1_i32 = arith.constant 1 : i32
    %22 = arith.select %21, %c1_i32, %c16_i32 : i32
    %23 = vector.broadcast %22 : i32 to vector<32x16xi32>
    %24 = arith.remsi %20, %23 : vector<32x16xi32>
    %c0_i32_11 = arith.constant 0 : i32
    %25 = vector.broadcast %c0_i32_11 : i32 to vector<32x16xi32>
    %26 = arith.cmpi ne, %24, %25 : vector<32x16xi32>
    %c0_i32_12 = arith.constant 0 : i32
    %27 = vector.broadcast %c0_i32_12 : i32 to vector<32x16xi32>
    %28 = arith.cmpi slt, %24, %27 : vector<32x16xi32>
    %c0_i32_13 = arith.constant 0 : i32
    %29 = arith.cmpi slt, %22, %c0_i32_13 : i32
    %30 = vector.broadcast %29 : i1 to vector<32x16xi1>
    %31 = vector.broadcast %30 : vector<32x16xi1> to vector<32x16xi1>
    %32 = arith.xori %28, %31 : vector<32x16xi1>
    %33 = arith.andi %32, %26 : vector<32x16xi1>
    %34 = vector.broadcast %22 : i32 to vector<32x16xi32>
    %35 = arith.addi %24, %34 : vector<32x16xi32>
    %36 = arith.select %33, %35, %24 : vector<32x16xi1>, vector<32x16xi32>
    %c3_i32 = arith.constant 3 : i32
    %37 = tpu.dynamic_rotate %19 by %c3_i32 dim 0 : vector<32x16xf32>, i32 -> vector<32x16xf32>
    %c-3_i32 = arith.constant -3 : i32
    %38 = vector.broadcast %c-3_i32 : i32 to vector<32x16xi32>
    %39 = arith.addi %36, %38 : vector<32x16xi32>
    %c0_i32_14 = arith.constant 0 : i32
    %40 = vector.broadcast %c0_i32_14 : i32 to vector<32x16xi32>
    %41 = arith.cmpi sge, %39, %40 : vector<32x16xi32>
    %c-3_i32_15 = arith.constant -3 : i32
    %42 = vector.broadcast %c-3_i32_15 : i32 to vector<32x16xi32>
    %43 = arith.addi %36, %42 : vector<32x16xi32>
    %c16_i32_16 = arith.constant 16 : i32
    %44 = vector.broadcast %c16_i32_16 : i32 to vector<32x16xi32>
    %45 = arith.cmpi slt, %43, %44 : vector<32x16xi32>
    %46 = arith.andi %41, %45 : vector<32x16xi1>
    %cst_17 = arith.constant 0.000000e+00 : f32
    %47 = vector.broadcast %cst_17 : f32 to vector<32x16xf32>
    %48 = arith.select %46, %37, %47 : vector<32x16xi1>, vector<32x16xf32>
    %c2_i32 = arith.constant 2 : i32
    %49 = tpu.dynamic_rotate %19 by %c2_i32 dim 0 : vector<32x16xf32>, i32 -> vector<32x16xf32>
    %c-2_i32 = arith.constant -2 : i32
    %50 = vector.broadcast %c-2_i32 : i32 to vector<32x16xi32>
    %51 = arith.addi %36, %50 : vector<32x16xi32>
    %c0_i32_18 = arith.constant 0 : i32
    %52 = vector.broadcast %c0_i32_18 : i32 to vector<32x16xi32>
    %53 = arith.cmpi sge, %51, %52 : vector<32x16xi32>
    %c-2_i32_19 = arith.constant -2 : i32
    %54 = vector.broadcast %c-2_i32_19 : i32 to vector<32x16xi32>
    %55 = arith.addi %36, %54 : vector<32x16xi32>
    %c16_i32_20 = arith.constant 16 : i32
    %56 = vector.broadcast %c16_i32_20 : i32 to vector<32x16xi32>
    %57 = arith.cmpi slt, %55, %56 : vector<32x16xi32>
    %58 = arith.andi %53, %57 : vector<32x16xi1>
    %cst_21 = arith.constant 0.000000e+00 : f32
    %59 = vector.broadcast %cst_21 : f32 to vector<32x16xf32>
    %60 = arith.select %58, %49, %59 : vector<32x16xi1>, vector<32x16xf32>
    %c1_i32_22 = arith.constant 1 : i32
    %61 = tpu.dynamic_rotate %19 by %c1_i32_22 dim 0 : vector<32x16xf32>, i32 -> vector<32x16xf32>
    %c-1_i32 = arith.constant -1 : i32
    %62 = vector.broadcast %c-1_i32 : i32 to vector<32x16xi32>
    %63 = arith.addi %36, %62 : vector<32x16xi32>
    %c0_i32_23 = arith.constant 0 : i32
    %64 = vector.broadcast %c0_i32_23 : i32 to vector<32x16xi32>
    %65 = arith.cmpi sge, %63, %64 : vector<32x16xi32>
    %c-1_i32_24 = arith.constant -1 : i32
    %66 = vector.broadcast %c-1_i32_24 : i32 to vector<32x16xi32>
    %67 = arith.addi %36, %66 : vector<32x16xi32>
    %c16_i32_25 = arith.constant 16 : i32
    %68 = vector.broadcast %c16_i32_25 : i32 to vector<32x16xi32>
    %69 = arith.cmpi slt, %67, %68 : vector<32x16xi32>
    %70 = arith.andi %65, %69 : vector<32x16xi1>
    %cst_26 = arith.constant 0.000000e+00 : f32
    %71 = vector.broadcast %cst_26 : f32 to vector<32x16xf32>
    %72 = arith.select %70, %61, %71 : vector<32x16xi1>, vector<32x16xf32>
    %c31_i32 = arith.constant 31 : i32
    %73 = tpu.dynamic_rotate %19 by %c31_i32 dim 0 : vector<32x16xf32>, i32 -> vector<32x16xf32>
    %c1_i32_27 = arith.constant 1 : i32
    %74 = vector.broadcast %c1_i32_27 : i32 to vector<32x16xi32>
    %75 = arith.addi %36, %74 : vector<32x16xi32>
    %c0_i32_28 = arith.constant 0 : i32
    %76 = vector.broadcast %c0_i32_28 : i32 to vector<32x16xi32>
    %77 = arith.cmpi sge, %75, %76 : vector<32x16xi32>
    %c1_i32_29 = arith.constant 1 : i32
    %78 = vector.broadcast %c1_i32_29 : i32 to vector<32x16xi32>
    %79 = arith.addi %36, %78 : vector<32x16xi32>
    %c16_i32_30 = arith.constant 16 : i32
    %80 = vector.broadcast %c16_i32_30 : i32 to vector<32x16xi32>
    %81 = arith.cmpi slt, %79, %80 : vector<32x16xi32>
    %82 = arith.andi %77, %81 : vector<32x16xi1>
    %cst_31 = arith.constant 0.000000e+00 : f32
    %83 = vector.broadcast %cst_31 : f32 to vector<32x16xf32>
    %84 = arith.select %82, %73, %83 : vector<32x16xi1>, vector<32x16xf32>
    %c30_i32 = arith.constant 30 : i32
    %85 = tpu.dynamic_rotate %19 by %c30_i32 dim 0 : vector<32x16xf32>, i32 -> vector<32x16xf32>
    %c2_i32_32 = arith.constant 2 : i32
    %86 = vector.broadcast %c2_i32_32 : i32 to vector<32x16xi32>
    %87 = arith.addi %36, %86 : vector<32x16xi32>
    %c0_i32_33 = arith.constant 0 : i32
    %88 = vector.broadcast %c0_i32_33 : i32 to vector<32x16xi32>
    %89 = arith.cmpi sge, %87, %88 : vector<32x16xi32>
    %c2_i32_34 = arith.constant 2 : i32
    %90 = vector.broadcast %c2_i32_34 : i32 to vector<32x16xi32>
    %91 = arith.addi %36, %90 : vector<32x16xi32>
    %c16_i32_35 = arith.constant 16 : i32
    %92 = vector.broadcast %c16_i32_35 : i32 to vector<32x16xi32>
    %93 = arith.cmpi slt, %91, %92 : vector<32x16xi32>
    %94 = arith.andi %89, %93 : vector<32x16xi1>
    %cst_36 = arith.constant 0.000000e+00 : f32
    %95 = vector.broadcast %cst_36 : f32 to vector<32x16xf32>
    %96 = arith.select %94, %85, %95 : vector<32x16xi1>, vector<32x16xf32>
    %c29_i32 = arith.constant 29 : i32
    %97 = tpu.dynamic_rotate %19 by %c29_i32 dim 0 : vector<32x16xf32>, i32 -> vector<32x16xf32>
    %c3_i32_37 = arith.constant 3 : i32
    %98 = vector.broadcast %c3_i32_37 : i32 to vector<32x16xi32>
    %99 = arith.addi %36, %98 : vector<32x16xi32>
    %c0_i32_38 = arith.constant 0 : i32
    %100 = vector.broadcast %c0_i32_38 : i32 to vector<32x16xi32>
    %101 = arith.cmpi sge, %99, %100 : vector<32x16xi32>
    %c3_i32_39 = arith.constant 3 : i32
    %102 = vector.broadcast %c3_i32_39 : i32 to vector<32x16xi32>
    %103 = arith.addi %36, %102 : vector<32x16xi32>
    %c16_i32_40 = arith.constant 16 : i32
    %104 = vector.broadcast %c16_i32_40 : i32 to vector<32x16xi32>
    %105 = arith.cmpi slt, %103, %104 : vector<32x16xi32>
    %106 = arith.andi %101, %105 : vector<32x16xi1>
    %cst_41 = arith.constant 0.000000e+00 : f32
    %107 = vector.broadcast %cst_41 : f32 to vector<32x16xf32>
    %108 = arith.select %106, %97, %107 : vector<32x16xi1>, vector<32x16xf32>
    %109 = tpu.concatenate %48, %60, %72, %19, %84, %96, %108 in 1 : vector<32x16xf32>, vector<32x16xf32>, vector<32x16xf32>, vector<32x16xf32>, vector<32x16xf32>, vector<32x16xf32>, vector<32x16xf32> -> vector<32x112xf32>
    %110 = arith.truncf %109 : vector<32x112xf32> to vector<32x112xbf16>
    %c0_42 = arith.constant 0 : index
    %c0_43 = arith.constant 0 : index
    %111 = vector.load %arg3[%c0_42, %c0_43] : memref<112x256xbf16, #tpu.memory_space<vmem>>, vector<112x256xbf16>
    %cst_44 = arith.constant dense<0.000000e+00> : vector<32x256xf32>
    %112 = tpu.matmul %110, %111, %cst_44 {dimension_numbers = #tpu.dot_dimension_numbers<[1], [0], [0], [1], [0, 0, 1, 1], [], []>} : vector<32x112xbf16>, vector<112x256xbf16>, vector<32x256xf32> -> vector<32x256xf32>
    %c0_45 = arith.constant 0 : index
    %c0_46 = arith.constant 0 : index
    %113 = vector.load %arg4[%c0_45, %c0_46] : memref<32x256xf32, #tpu.memory_space<vmem>>, vector<32x256xf32>
    tpu.vector_store %arg4[%c0_45, %c0_46], %112 {strides = array<i32>} : memref<32x256xf32, #tpu.memory_space<vmem>>, vector<32x256xf32>,
    return
  }
}

</mosaic_0001>

<llo_original>
// kernel: _lambda_.1
$region0: #{_lambda_.1}
  #allocation0 [shape = 'u32[]', space=smem, size = 0x4, offset = 0x4, fixed_abs, tag = 'smem constant byte address 0x4 - core index']
  #allocation1 [shape = 'u32[144,128]{1,0:T(1,128)}', space=vmem, size = 0x12000, scoped, tag = 'internal scratch']
  %s0 = inlined_call_operand.vmem [shape: bf16[32,64], index: 0, kind: input, shape index: {}]
  %s1 = inlined_call_operand.vmem [shape: bf16[64,128], index: 1, kind: input, shape index: {}]
  %s2 = inlined_call_operand.vmem [shape: f32[128,16], index: 2, kind: input, shape index: {}]
  %s3 = inlined_call_operand.vmem [shape: bf16[112,256], index: 3, kind: input, shape index: {}]
  %s4 = inlined_call_operand.vmem [shape: f32[32,256], index: 4, kind: output, shape index: {}]
  %s5 = sld [smem:[#allocation0]]
  $region26: #{_lambda_.1} parent=0
    _
  %s7 = ssub.s32 1, %s5
  %s8 = scalar_select 0, %s7, %s5
  // Predicated region
  $region2: #{_lambda_.1} parent=0 // pred_check
    _
  $region3: #{_lambda_.1} parent=0 // pred_check_branch
    %10 = sbr.rel (0) target = $region5
  $region4: #{_lambda_.1} parent=0 // pred_region
    _
  $region5: #{_lambda_.1} parent=0 // pred_fallthru
    _
  // Predicated region
  $region6: #{_lambda_.1} parent=0 // pred_check
    _
  $region7: #{_lambda_.1} parent=0 // pred_check_branch
    %12 = sbr.rel (0) target = $region9
  $region8: #{_lambda_.1} parent=0 // pred_region
    _
  $region9: #{_lambda_.1} parent=0 // pred_fallthru
    _
  // Predicated region
  $region10: #{_lambda_.1} parent=0 // pred_check
    _
  $region11: #{_lambda_.1} parent=0 // pred_check_branch
    %14 = sbr.rel (0) target = $region13
  $region12: #{_lambda_.1} parent=0 // pred_region
    _
  $region13: #{_lambda_.1} parent=0 // pred_fallthru
    _
  // Predicated region
  $region14: #{_lambda_.1} parent=0 // pred_check
    _
  $region15: #{_lambda_.1} parent=0 // pred_check_branch
    %16 = sbr.rel (0) target = $region17
  $region16: #{_lambda_.1} parent=0 // pred_region
    _
  $region17: #{_lambda_.1} parent=0 // pred_fallthru
    _
  %v18 = vld [vmem:[%s0] sm:$0xf]
  %v19 = vld [vmem:[%s0 + $0x4] sm:$0xf]
  %v20 = vld [vmem:[%s0 + $0x8] sm:$0xf]
  %v21 = vld [vmem:[%s0 + $0xc] sm:$0xf]
  %v22 = vld [vmem:[%s1] sm:$0xf]
  %v23 = vld [vmem:[%s1 + $0x4] sm:$0xf]
  %v24 = vld [vmem:[%s1 + $0x8] sm:$0xf]
  %v25 = vld [vmem:[%s1 + $0xc] sm:$0xf]
  %v26 = vld [vmem:[%s1 + $0x10] sm:$0xf]
  %v27 = vld [vmem:[%s1 + $0x14] sm:$0xf]
  %v28 = vld [vmem:[%s1 + $0x18] sm:$0xf]
  %v29 = vld [vmem:[%s1 + $0x1c] sm:$0xf]
  %v34 = vunpack.c.l.b16 %v18
  %v35 = vunpack.c.l.b16 %v19
  %v36 = vunpack.c.l.b16 %v20
  %v37 = vunpack.c.l.b16 %v21
  %v38 = vpack.c.b16 %v35, %v34
  %v39 = vpack.c.b16 %v37, %v36
  %v48 = vunpack.c.l.b16 %v22
  %v49 = vunpack.c.l.b16 %v23
  %v50 = vunpack.c.l.b16 %v24
  %v51 = vunpack.c.l.b16 %v25
  %v52 = vunpack.c.l.b16 %v26
  %v53 = vunpack.c.l.b16 %v27
  %v54 = vunpack.c.l.b16 %v28
  %v55 = vunpack.c.l.b16 %v29
  %v56 = vpack.c.b16 %v49, %v48
  %v57 = vpack.c.b16 %v51, %v50
  %v58 = vpack.c.b16 %v53, %v52
  %v59 = vpack.c.b16 %v55, %v54
  %vm64 = vcmask 523264
  %v66 = vsel %vm64, %v38, 0
  %v69 = vsel %vm64, %v39, 0
  %71 = vmatprep.subr.bf16.mxu0 0
  %72 = vmatpush1.bf16.msra.mxu0 0
  %73 = vmatprep.subr.bf16.mxu0 0
  %74 = vmatpush1.bf16.msra.mxu0 0
  %75 = vmatprep.subr.bf16.mxu0 0
  %76 = vmatpush1.bf16.msra.mxu0 0
  %77 = vmatprep.subr.bf16.mxu0 0
  %78 = vmatpush1.bf16.msra.mxu0 0
  %79 = vmatprep.subr.bf16.mxu0 0
  %80 = vmatpush1.bf16.msra.mxu0 %v59
  %81 = vmatprep.subr.bf16.mxu0 0
  %82 = vmatpush1.bf16.msra.mxu0 %v58
  %83 = vmatprep.subr.bf16.mxu0 0
  %84 = vmatpush1.bf16.msra.mxu0 %v57
  %85 = vmatprep.subr.bf16.mxu0 0
  %86 = vmatpush1.bf16.msra.mxu0 %v56
  %87 = vmatprep.subr.bf16.mxu0 0
  %88 = vmatpush2.bf16.msra.mxu0 0
  %89 = vmatprep.subr.bf16.mxu0 0
  %90 = vmatpush2.bf16.msra.mxu0 0
  %91 = vmatprep.subr.bf16.mxu0 0
  %92 = vmatpush2.bf16.msra.mxu0 0
  %93 = vmatprep.subr.bf16.mxu0 0
  %94 = vmatpush2.bf16.msra.mxu0 0
  %95 = vmatprep.subr.bf16.mxu0 0
  %96 = vmatpush2.bf16.msra.mxu0 0
  %97 = vmatprep.subr.bf16.mxu0 0
  %98 = vmatpush2.bf16.msra.mxu0 0
  %99 = vmatprep.subr.bf16.mxu0 0
  %100 = vmatpush2.bf16.msra.mxu0 0
  %101 = vmatprep.subr.bf16.mxu0 0
  %102 = vmatpush2.bf16.msra.mxu0 0
  %103 = vmatprep.mubr.bf16.mxu0 0
  %104 = vmatmul.mubr.bf16.gmra.mxu0 %v66
  %v105 = vpop.f32.mrf.mxu0
  %v106 = vadd.f32 0.0, %v105
  %v107 = vpop.f32.mrf.mxu0
  %v108 = vpop.f32.mrf.mxu0
  %v109 = vadd.f32 0.0, %v108
  %v110 = vpop.f32.mrf.mxu0
  %111 = vmatprep.mubr.bf16.mxu0 0
  %112 = vmatmul.mubr.bf16.gmra.mxu0 %v69
  %v113 = vpop.f32.mrf.mxu0
  %v114 = vadd.f32 0.0, %v113
  %v115 = vpop.f32.mrf.mxu0
  %v116 = vpop.f32.mrf.mxu0
  %v117 = vadd.f32 0.0, %v116
  %v118 = vpop.f32.mrf.mxu0
  %119 = vdwg.mxu0
  %v120 = vmul.f32 %v106, %v106
  %v121 = vmul.f32 %v109, %v109
  %v122 = vmul.f32 %v114, %v114
  %v123 = vmul.f32 %v117, %v117
  %v124 = vld [vmem:[%s2] sm:$0xff]
  %v125 = vld [vmem:[%s2 + $0x8] sm:$0xff]
  %v126 = vld [vmem:[%s2 + $0x10] sm:$0xff]
  %v127 = vld [vmem:[%s2 + $0x18] sm:$0xff]
  %v128 = vld [vmem:[%s2 + $0x20] sm:$0xff]
  %v129 = vld [vmem:[%s2 + $0x28] sm:$0xff]
  %v130 = vld [vmem:[%s2 + $0x30] sm:$0xff]
  %v131 = vld [vmem:[%s2 + $0x38] sm:$0xff]
  %v132 = vld [vmem:[%s2 + $0x40] sm:$0xff]
  %v133 = vld [vmem:[%s2 + $0x48] sm:$0xff]
  %v134 = vld [vmem:[%s2 + $0x50] sm:$0xff]
  %v135 = vld [vmem:[%s2 + $0x58] sm:$0xff]
  %v136 = vld [vmem:[%s2 + $0x60] sm:$0xff]
  %v137 = vld [vmem:[%s2 + $0x68] sm:$0xff]
  %v138 = vld [vmem:[%s2 + $0x70] sm:$0xff]
  %v139 = vld [vmem:[%s2 + $0x78] sm:$0xff]
  %140 = vmatprep.subr.mxu0 0.0
  %141 = vmatpush1.msra.mxu0 %v139
  %142 = vmatprep.subr.mxu0 0.0
  %143 = vmatpush1.msra.mxu0 %v138
  %144 = vmatprep.subr.mxu0 0.0
  %145 = vmatpush1.msra.mxu0 %v137
  %146 = vmatprep.subr.mxu0 0.0
  %147 = vmatpush1.msra.mxu0 %v136
  %148 = vmatprep.subr.mxu0 0.0
  %149 = vmatpush1.msra.mxu0 %v135
  %150 = vmatprep.subr.mxu0 0.0
  %151 = vmatpush1.msra.mxu0 %v134
  %152 = vmatprep.subr.mxu0 0.0
  %153 = vmatpush1.msra.mxu0 %v133
  %154 = vmatprep.subr.mxu0 0.0
  %155 = vmatpush1.msra.mxu0 %v132
  %156 = vmatprep.subr.mxu0 0.0
  %157 = vmatpush1.msra.mxu0 %v131
  %158 = vmatprep.subr.mxu0 0.0
  %159 = vmatpush1.msra.mxu0 %v130
  %160 = vmatprep.subr.mxu0 0.0
  %161 = vmatpush1.msra.mxu0 %v129
  %162 = vmatprep.subr.mxu0 0.0
  %163 = vmatpush1.msra.mxu0 %v128
  %164 = vmatprep.subr.mxu0 0.0
  %165 = vmatpush1.msra.mxu0 %v127
  %166 = vmatprep.subr.mxu0 0.0
  %167 = vmatpush1.msra.mxu0 %v126
  %168 = vmatprep.subr.mxu0 0.0
  %169 = vmatpush1.msra.mxu0 %v125
  %170 = vmatprep.subr.mxu0 0.0
  %171 = vmatpush1.msra.mxu0 %v124
  %172 = vmatprep.subr.mxu0 0.0
  %173 = vmatpush2.msra.mxu0 0.0
  %174 = vmatprep.subr.mxu0 0.0
  %175 = vmatpush2.msra.mxu0 0.0
  %176 = vmatprep.subr.mxu0 0.0
  %177 = vmatpush2.msra.mxu0 0.0
  %178 = vmatprep.subr.mxu0 0.0
  %179 = vmatpush2.msra.mxu0 0.0
  %180 = vmatprep.subr.mxu0 0.0
  %181 = vmatpush2.msra.mxu0 0.0
  %182 = vmatprep.subr.mxu0 0.0
  %183 = vmatpush2.msra.mxu0 0.0
  %184 = vmatprep.subr.mxu0 0.0
  %185 = vmatpush2.msra.mxu0 0.0
  %186 = vmatprep.subr.mxu0 0.0
  %187 = vmatpush2.msra.mxu0 0.0
  %188 = vmatprep.subr.mxu0 0.0
  %189 = vmatpush2.msra.mxu0 0.0
  %190 = vmatprep.subr.mxu0 0.0
  %191 = vmatpush2.msra.mxu0 0.0
  %192 = vmatprep.subr.mxu0 0.0
  %193 = vmatpush2.msra.mxu0 0.0
  %194 = vmatprep.subr.mxu0 0.0
  %195 = vmatpush2.msra.mxu0 0.0
  %196 = vmatprep.subr.mxu0 0.0
  %197 = vmatpush2.msra.mxu0 0.0
  %198 = vmatprep.subr.mxu0 0.0
  %199 = vmatpush2.msra.mxu0 0.0
  %200 = vmatprep.subr.mxu0 0.0
  %201 = vmatpush2.msra.mxu0 0.0
  %202 = vmatprep.subr.mxu0 0.0
  %203 = vmatpush2.msra.mxu0 0.0
  %204 = vmatprep.mubr.f32.mxu0 0.0
  %205 = vmatmul.mubr.f32.gmra.mxu0 %v120
  %v206 = vpop.f32.mrf.mxu0
  %v207 = vadd.f32 0.0, %v206
  %v208 = vpop.f32.mrf.mxu0
  %209 = vmatprep.mubr.f32.mxu0 0.0
  %210 = vmatmul.mubr.f32.gmra.mxu0 %v121
  %v211 = vpop.f32.mrf.mxu0
  %v212 = vadd.f32 0.0, %v211
  %v213 = vpop.f32.mrf.mxu0
  %214 = vmatprep.mubr.f32.mxu0 0.0
  %215 = vmatmul.mubr.f32.gmra.mxu0 %v122
  %v216 = vpop.f32.mrf.mxu0
  %v217 = vadd.f32 0.0, %v216
  %v218 = vpop.f32.mrf.mxu0
  %219 = vmatprep.mubr.f32.mxu0 0.0
  %220 = vmatmul.mubr.f32.gmra.mxu0 %v123
  %v221 = vpop.f32.mrf.mxu0
  %v222 = vadd.f32 0.0, %v221
  %v223 = vpop.f32.mrf.mxu0
  %224 = vdwg.mxu0
  %v225 = vmax.f32 %v207, 1e-10
  %v226 = vmax.f32 %v212, 1e-10
  %v227 = vmax.f32 %v217, 1e-10
  %v228 = vmax.f32 %v222, 1e-10
  %vm229 = vcmask 130048
  %v230 = vsel %vm229, %v225, -inf
  %v231 = vsel %vm229, %v226, -inf
  %v232 = vsel %vm229, %v227, -inf
  %v233 = vsel %vm229, %v228, -inf
  %v234 = vmax.f32 %v230, %v231
  %v235 = vmax.f32 %v232, %v233
  %v236 = vmax.f32 %v234, %v235
  %237 = vmax.xlane.f32.xlu0 %v236
  %v238 = vpop.xlane.xlu0 %237
  %v239 = vrot.slane %v238, 4
  %v240 = vmax.f32 %v238, %v239
  %v241 = vrot.slane %v240, 2
  %v242 = vmax.f32 %v240, %v241
  %v243 = vrot.slane %v242, 1
  %v244 = vmax.f32 %v242, %v243
  %s245 = vtos %v244
  %v246 = vlog2.pop %v225
  %v247 = vmul.f32 %v246, 0.6931472
  %v248 = vlog2.pop %v226
  %v249 = vmul.f32 %v248, 0.6931472
  %v250 = vlog2.pop %v227
  %v251 = vmul.f32 %v250, 0.6931472
  %v252 = vlog2.pop %v228
  %v253 = vmul.f32 %v252, 0.6931472
  %v254 = vmul.f32 %v247, 4.3429446
  %v255 = vmul.f32 %v249, 4.3429446
  %v256 = vmul.f32 %v251, 4.3429446
  %v257 = vmul.f32 %v253, 4.3429446
  %v258 = vstv %s245
  %v259 = vlog2.pop %v258
  %v260 = vmul.f32 %v259, 0.6931472
  %s261 = vtos %v260
  %s262 = smul.f32 %s261, 4.3429446
  %s263 = ssub.f32 %s262, 80.0
  %v264 = vstv %s263
  %v265 = vmax.f32 %v254, %v264
  %v266 = vmax.f32 %v255, %v264
  %v267 = vmax.f32 %v256, %v264
  %v268 = vmax.f32 %v257, %v264
  %v269 = vlaneseq
  %v270 = vshrl.u32 %v269, 7
  %v271 = vadd.s32 %v270, 8
  %v272 = vadd.s32 %v270, 16
  %v273 = vadd.s32 %v270, 24
  %vm274 = vcmp.lt.s32.totalorder %v270, 0
  %v275 = vsub.s32 0, %v270
  %v276 = vsel %vm274, %v275, %v270
  %v277 = vshrl.u32 %v276, 4
  %v278 = vand.u32 %v276, 15
  %v279 = vsub.s32 0, %v278
  %v280 = vsel %vm274, %v279, %v278
  %vm281 = vcmp.lt.s32.totalorder %v271, 0
  %v282 = vsub.s32 0, %v271
  %v283 = vsel %vm281, %v282, %v271
  %v284 = vshrl.u32 %v283, 4
  %v285 = vand.u32 %v283, 15
  %v286 = vsub.s32 0, %v285
  %v287 = vsel %vm281, %v286, %v285
  %vm288 = vcmp.lt.s32.totalorder %v272, 0
  %v289 = vsub.s32 0, %v272
  %v290 = vsel %vm288, %v289, %v272
  %v291 = vshrl.u32 %v290, 4
  %v292 = vand.u32 %v290, 15
  %v293 = vsub.s32 0, %v292
  %v294 = vsel %vm288, %v293, %v292
  %vm295 = vcmp.lt.s32.totalorder %v273, 0
  %v296 = vsub.s32 0, %v273
  %v297 = vsel %vm295, %v296, %v273
  %v298 = vshrl.u32 %v297, 4
  %v299 = vand.u32 %v297, 15
  %v300 = vsub.s32 0, %v299
  %v301 = vsel %vm295, %v300, %v299
  %vm302 = vcmp.ne.s32.totalorder %v280, 0
  %vm303 = vcmp.ne.s32.totalorder %v287, 0
  %vm304 = vcmp.ne.s32.totalorder %v294, 0
  %vm305 = vcmp.ne.s32.totalorder %v301, 0
  %vm306 = vcmp.lt.s32.totalorder %v280, 0
  %vm307 = vcmp.lt.s32.totalorder %v287, 0
  %vm308 = vcmp.lt.s32.totalorder %v294, 0
  %vm309 = vcmp.lt.s32.totalorder %v301, 0
  %vm310 = vmand %vm306, %vm302
  %vm311 = vmand %vm307, %vm303
  %vm312 = vmand %vm308, %vm304
  %vm313 = vmand %vm309, %vm305
  %v314 = vadd.s32 %v280, 16
  %v315 = vadd.s32 %v287, 16
  %v316 = vadd.s32 %v294, 16
  %v317 = vadd.s32 %v301, 16
  %v318 = vsel %vm310, %v314, %v280
  %v319 = vsel %vm311, %v315, %v287
  %v320 = vsel %vm312, %v316, %v294
  %v321 = vsel %vm313, %v317, %v301
  %v322 = vrot.slane %v265, 5
  %v323 = vrot.slane %v266, 5
  %v324 = vrot.slane %v267, 5
  %v325 = vrot.slane %v268, 5
  %vm326 = vcmp.lt.s32.totalorder %v270, 3
  %v327 = vsel %vm326, %v324, %v325
  %v328 = vsel %vm326, %v323, %v324
  %v329 = vsel %vm326, %v322, %v323
  %v330 = vsel %vm326, %v325, %v322
  %v331 = vadd.s32 %v318, 4294967293
  %v332 = vadd.s32 %v319, 4294967293
  %v333 = vadd.s32 %v320, 4294967293
  %v334 = vadd.s32 %v321, 4294967293
  %vm335 = vcmp.ge.s32.totalorder %v331, 0
  %vm336 = vcmp.ge.s32.totalorder %v332, 0
  %vm337 = vcmp.ge.s32.totalorder %v333, 0
  %vm338 = vcmp.ge.s32.totalorder %v334, 0
  %vm339 = vcmp.lt.s32.totalorder %v331, 16
  %vm340 = vcmp.lt.s32.totalorder %v332, 16
  %vm341 = vcmp.lt.s32.totalorder %v333, 16
  %vm342 = vcmp.lt.s32.totalorder %v334, 16
  %vm343 = vmand %vm335, %vm339
  %vm344 = vmand %vm336, %vm340
  %vm345 = vmand %vm337, %vm341
  %vm346 = vmand %vm338, %vm342
  %v347 = vsel %vm343, %v330, 0.0
  %v348 = vsel %vm344, %v329, 0.0
  %v349 = vsel %vm345, %v328, 0.0
  %v350 = vsel %vm346, %v327, 0.0
  %v351 = vrot.slane %v265, 6
  %v352 = vrot.slane %v266, 6
  %v353 = vrot.slane %v267, 6
  %v354 = vrot.slane %v268, 6
  %vm355 = vcmp.lt.s32.totalorder %v270, 2
  %v356 = vsel %vm355, %v353, %v354
  %v357 = vsel %vm355, %v352, %v353
  %v358 = vsel %vm355, %v351, %v352
  %v359 = vsel %vm355, %v354, %v351
  %v360 = vadd.s32 %v318, 4294967294
  %v361 = vadd.s32 %v319, 4294967294
  %v362 = vadd.s32 %v320, 4294967294
  %v363 = vadd.s32 %v321, 4294967294
  %vm364 = vcmp.ge.s32.totalorder %v360, 0
  %vm365 = vcmp.ge.s32.totalorder %v361, 0
  %vm366 = vcmp.ge.s32.totalorder %v362, 0
  %vm367 = vcmp.ge.s32.totalorder %v363, 0
  %vm368 = vcmp.lt.s32.totalorder %v360, 16
  %vm369 = vcmp.lt.s32.totalorder %v361, 16
  %vm370 = vcmp.lt.s32.totalorder %v362, 16
  %vm371 = vcmp.lt.s32.totalorder %v363, 16
  %vm372 = vmand %vm364, %vm368
  %vm373 = vmand %vm365, %vm369
  %vm374 = vmand %vm366, %vm370
  %vm375 = vmand %vm367, %vm371
  %v376 = vsel %vm372, %v359, 0.0
  %v377 = vsel %vm373, %v358, 0.0
  %v378 = vsel %vm374, %v357, 0.0
  %v379 = vsel %vm375, %v356, 0.0
  %v380 = vrot.slane %v265, 7
  %v381 = vrot.slane %v266, 7
  %v382 = vrot.slane %v267, 7
  %v383 = vrot.slane %v268, 7
  %vm384 = vcmp.lt.s32.totalorder %v270, 1
  %v385 = vsel %vm384, %v382, %v383
  %v386 = vsel %vm384, %v381, %v382
  %v387 = vsel %vm384, %v380, %v381
  %v388 = vsel %vm384, %v383, %v380
  %v389 = vadd.s32 %v318, 4294967295
  %v390 = vadd.s32 %v319, 4294967295
  %v391 = vadd.s32 %v320, 4294967295
  %v392 = vadd.s32 %v321, 4294967295
  %vm393 = vcmp.ge.s32.totalorder %v389, 0
  %vm394 = vcmp.ge.s32.totalorder %v390, 0
  %vm395 = vcmp.ge.s32.totalorder %v391, 0
  %vm396 = vcmp.ge.s32.totalorder %v392, 0
  %vm397 = vcmp.lt.s32.totalorder %v389, 16
  %vm398 = vcmp.lt.s32.totalorder %v390, 16
  %vm399 = vcmp.lt.s32.totalorder %v391, 16
  %vm400 = vcmp.lt.s32.totalorder %v392, 16
  %vm401 = vmand %vm393, %vm397
  %vm402 = vmand %vm394, %vm398
  %vm403 = vmand %vm395, %vm399
  %vm404 = vmand %vm396, %vm400
  %v405 = vsel %vm401, %v388, 0.0
  %v406 = vsel %vm402, %v387, 0.0
  %v407 = vsel %vm403, %v386, 0.0
  %v408 = vsel %vm404, %v385, 0.0
  %v409 = vrot.slane %v265, 1
  %v410 = vrot.slane %v266, 1
  %v411 = vrot.slane %v267, 1
  %v412 = vrot.slane %v268, 1
  %vm413 = vcmp.lt.s32.totalorder %v270, 7
  %v414 = vsel %vm413, %v411, %v412
  %v415 = vsel %vm413, %v410, %v411
  %v416 = vsel %vm413, %v409, %v410
  %v417 = vsel %vm413, %v412, %v409
  %v418 = vadd.s32 %v318, 1
  %v419 = vadd.s32 %v319, 1
  %v420 = vadd.s32 %v320, 1
  %v421 = vadd.s32 %v321, 1
  %vm422 = vcmp.ge.s32.totalorder %v418, 0
  %vm423 = vcmp.ge.s32.totalorder %v419, 0
  %vm424 = vcmp.ge.s32.totalorder %v420, 0
  %vm425 = vcmp.ge.s32.totalorder %v421, 0
  %vm426 = vcmp.lt.s32.totalorder %v418, 16
  %vm427 = vcmp.lt.s32.totalorder %v419, 16
  %vm428 = vcmp.lt.s32.totalorder %v420, 16
  %vm429 = vcmp.lt.s32.totalorder %v421, 16
  %vm430 = vmand %vm422, %vm426
  %vm431 = vmand %vm423, %vm427
  %vm432 = vmand %vm424, %vm428
  %vm433 = vmand %vm425, %vm429
  %v434 = vsel %vm430, %v416, 0.0
  %v435 = vsel %vm431, %v415, 0.0
  %v436 = vsel %vm432, %v414, 0.0
  %v437 = vsel %vm433, %v417, 0.0
  %v438 = vrot.slane %v265, 2
  %v439 = vrot.slane %v266, 2
  %v440 = vrot.slane %v267, 2
  %v441 = vrot.slane %v268, 2
  %vm442 = vcmp.lt.s32.totalorder %v270, 6
  %v443 = vsel %vm442, %v440, %v441
  %v444 = vsel %vm442, %v439, %v440
  %v445 = vsel %vm442, %v438, %v439
  %v446 = vsel %vm442, %v441, %v438
  %v447 = vadd.s32 %v318, 2
  %v448 = vadd.s32 %v319, 2
  %v449 = vadd.s32 %v320, 2
  %v450 = vadd.s32 %v321, 2
  %vm451 = vcmp.ge.s32.totalorder %v447, 0
  %vm452 = vcmp.ge.s32.totalorder %v448, 0
  %vm453 = vcmp.ge.s32.totalorder %v449, 0
  %vm454 = vcmp.ge.s32.totalorder %v450, 0
  %vm455 = vcmp.lt.s32.totalorder %v447, 16
  %vm456 = vcmp.lt.s32.totalorder %v448, 16
  %vm457 = vcmp.lt.s32.totalorder %v449, 16
  %vm458 = vcmp.lt.s32.totalorder %v450, 16
  %vm459 = vmand %vm451, %vm455
  %vm460 = vmand %vm452, %vm456
  %vm461 = vmand %vm453, %vm457
  %vm462 = vmand %vm454, %vm458
  %v463 = vsel %vm459, %v445, 0.0
  %v464 = vsel %vm460, %v444, 0.0
  %v465 = vsel %vm461, %v443, 0.0
  %v466 = vsel %vm462, %v446, 0.0
  %v467 = vrot.slane %v265, 3
  %v468 = vrot.slane %v266, 3
  %v469 = vrot.slane %v267, 3
  %v470 = vrot.slane %v268, 3
  %vm471 = vcmp.lt.s32.totalorder %v270, 5
  %v472 = vsel %vm471, %v469, %v470
  %v473 = vsel %vm471, %v468, %v469
  %v474 = vsel %vm471, %v467, %v468
  %v475 = vsel %vm471, %v470, %v467
  %v476 = vadd.s32 %v318, 3
  %v477 = vadd.s32 %v319, 3
  %v478 = vadd.s32 %v320, 3
  %v479 = vadd.s32 %v321, 3
  %vm480 = vcmp.ge.s32.totalorder %v476, 0
  %vm481 = vcmp.ge.s32.totalorder %v477, 0
  %vm482 = vcmp.ge.s32.totalorder %v478, 0
  %vm483 = vcmp.ge.s32.totalorder %v479, 0
  %vm484 = vcmp.lt.s32.totalorder %v476, 16
  %vm485 = vcmp.lt.s32.totalorder %v477, 16
  %vm486 = vcmp.lt.s32.totalorder %v478, 16
  %vm487 = vcmp.lt.s32.totalorder %v479, 16
  %vm488 = vmand %vm480, %vm484
  %vm489 = vmand %vm481, %vm485
  %vm490 = vmand %vm482, %vm486
  %vm491 = vmand %vm483, %vm487
  %v492 = vsel %vm488, %v474, 0.0
  %v493 = vsel %vm489, %v473, 0.0
  %v494 = vsel %vm490, %v472, 0.0
  %v495 = vsel %vm491, %v475, 0.0
  %500 = vrot.lane.b32.xlu0 %v376, 16
  %v501 = vpop.permute.xlu0 %500
  %502 = vrot.lane.b32.xlu0 %v377, 16
  %v503 = vpop.permute.xlu0 %502
  %504 = vrot.lane.b32.xlu0 %v378, 16
  %v505 = vpop.permute.xlu0 %504
  %506 = vrot.lane.b32.xlu0 %v379, 16
  %v507 = vpop.permute.xlu0 %506
  %516 = vrot.lane.b32.xlu0 %v405, 32
  %v517 = vpop.permute.xlu0 %516
  %518 = vrot.lane.b32.xlu0 %v406, 32
  %v519 = vpop.permute.xlu0 %518
  %520 = vrot.lane.b32.xlu0 %v407, 32
  %v521 = vpop.permute.xlu0 %520
  %522 = vrot.lane.b32.xlu0 %v408, 32
  %v523 = vpop.permute.xlu0 %522
  %532 = vrot.lane.b32.xlu0 %v265, 48
  %v533 = vpop.permute.xlu0 %532
  %534 = vrot.lane.b32.xlu0 %v266, 48
  %v535 = vpop.permute.xlu0 %534
  %536 = vrot.lane.b32.xlu0 %v267, 48
  %v537 = vpop.permute.xlu0 %536
  %538 = vrot.lane.b32.xlu0 %v268, 48
  %v539 = vpop.permute.xlu0 %538
  %548 = vrot.lane.b32.xlu0 %v434, 64
  %v549 = vpop.permute.xlu0 %548
  %550 = vrot.lane.b32.xlu0 %v435, 64
  %v551 = vpop.permute.xlu0 %550
  %552 = vrot.lane.b32.xlu0 %v436, 64
  %v553 = vpop.permute.xlu0 %552
  %554 = vrot.lane.b32.xlu0 %v437, 64
  %v555 = vpop.permute.xlu0 %554
  %564 = vrot.lane.b32.xlu0 %v463, 80
  %v565 = vpop.permute.xlu0 %564
  %566 = vrot.lane.b32.xlu0 %v464, 80
  %v567 = vpop.permute.xlu0 %566
  %568 = vrot.lane.b32.xlu0 %v465, 80
  %v569 = vpop.permute.xlu0 %568
  %570 = vrot.lane.b32.xlu0 %v466, 80
  %v571 = vpop.permute.xlu0 %570
  %580 = vrot.lane.b32.xlu0 %v492, 96
  %v581 = vpop.permute.xlu0 %580
  %582 = vrot.lane.b32.xlu0 %v493, 96
  %v583 = vpop.permute.xlu0 %582
  %584 = vrot.lane.b32.xlu0 %v494, 96
  %v585 = vpop.permute.xlu0 %584
  %586 = vrot.lane.b32.xlu0 %v495, 96
  %v587 = vpop.permute.xlu0 %586
  %v592 = vsel %vm229, %v347, %v501
  %v593 = vsel %vm229, %v348, %v503
  %v594 = vsel %vm229, %v349, %v505
  %v595 = vsel %vm229, %v350, %v507
  %vm596 = vcmask 261120
  %v597 = vsel %vm596, %v592, %v517
  %v598 = vsel %vm596, %v593, %v519
  %v599 = vsel %vm596, %v594, %v521
  %v600 = vsel %vm596, %v595, %v523
  %vm601 = vcmask 392192
  %v602 = vsel %vm601, %v597, %v533
  %v603 = vsel %vm601, %v598, %v535
  %v604 = vsel %vm601, %v599, %v537
  %v605 = vsel %vm601, %v600, %v539
  %v606 = vsel %vm64, %v602, %v549
  %v607 = vsel %vm64, %v603, %v551
  %v608 = vsel %vm64, %v604, %v553
  %v609 = vsel %vm64, %v605, %v555
  %vm610 = vcmask 654336
  %v611 = vsel %vm610, %v606, %v565
  %v612 = vsel %vm610, %v607, %v567
  %v613 = vsel %vm610, %v608, %v569
  %v614 = vsel %vm610, %v609, %v571
  %vm615 = vcmask 785408
  %v616 = vsel %vm615, %v611, %v581
  %v617 = vsel %vm615, %v612, %v583
  %v618 = vsel %vm615, %v613, %v585
  %v619 = vsel %vm615, %v614, %v587
  %v620 = vpack.c.bf16 %v617, %v616
  %v621 = vpack.c.bf16 %v619, %v618
  %v622 = vld [vmem:[%s3] sm:$0xff]
  %v623 = vld [vmem:[%s3 + $0x8] sm:$0xff]
  %v624 = vld [vmem:[%s3 + $0x10] sm:$0xff]
  %v625 = vld [vmem:[%s3 + $0x18] sm:$0xff]
  %v626 = vld [vmem:[%s3 + $0x20] sm:$0xff]
  %v627 = vld [vmem:[%s3 + $0x28] sm:$0xff]
  %v628 = vld [vmem:[%s3 + $0x30] sm:$0xff]
  %v629 = vld [vmem:[%s3 + $0x38] sm:$0xff]
  %v630 = vld [vmem:[%s3 + $0x40] sm:$0xff]
  %v631 = vld [vmem:[%s3 + $0x48] sm:$0xff]
  %v632 = vld [vmem:[%s3 + $0x50] sm:$0xff]
  %v633 = vld [vmem:[%s3 + $0x58] sm:$0xff]
  %v634 = vld [vmem:[%s3 + $0x60] sm:$0xff]
  %v635 = vld [vmem:[%s3 + $0x68] sm:$0xff]
  %v650 = vunpack.c.l.b16 %v622
  %v651 = vunpack.c.h.b16 %v622
  %v652 = vunpack.c.l.b16 %v623
  %v653 = vunpack.c.h.b16 %v623
  %v654 = vunpack.c.l.b16 %v624
  %v655 = vunpack.c.h.b16 %v624
  %v656 = vunpack.c.l.b16 %v625
  %v657 = vunpack.c.h.b16 %v625
  %v658 = vunpack.c.l.b16 %v626
  %v659 = vunpack.c.h.b16 %v626
  %v660 = vunpack.c.l.b16 %v627
  %v661 = vunpack.c.h.b16 %v627
  %v662 = vunpack.c.l.b16 %v628
  %v663 = vunpack.c.h.b16 %v628
  %v664 = vunpack.c.l.b16 %v629
  %v665 = vunpack.c.h.b16 %v629
  %v666 = vunpack.c.l.b16 %v630
  %v667 = vunpack.c.h.b16 %v630
  %v668 = vunpack.c.l.b16 %v631
  %v669 = vunpack.c.h.b16 %v631
  %v670 = vunpack.c.l.b16 %v632
  %v671 = vunpack.c.h.b16 %v632
  %v672 = vunpack.c.l.b16 %v633
  %v673 = vunpack.c.h.b16 %v633
  %v674 = vunpack.c.l.b16 %v634
  %v675 = vunpack.c.h.b16 %v634
  %v676 = vunpack.c.l.b16 %v635
  %v677 = vunpack.c.h.b16 %v635
  %v678 = vpack.c.b16 %v652, %v650
  %v679 = vpack.c.b16 %v653, %v651
  %v680 = vpack.c.b16 %v656, %v654
  %v681 = vpack.c.b16 %v657, %v655
  %v682 = vpack.c.b16 %v660, %v658
  %v683 = vpack.c.b16 %v661, %v659
  %v684 = vpack.c.b16 %v664, %v662
  %v685 = vpack.c.b16 %v665, %v663
  %v686 = vpack.c.b16 %v668, %v666
  %v687 = vpack.c.b16 %v669, %v667
  %v688 = vpack.c.b16 %v672, %v670
  %v689 = vpack.c.b16 %v673, %v671
  %v690 = vpack.c.b16 %v676, %v674
  %v691 = vpack.c.b16 %v677, %v675
  %vm706 = vcmask 916480
  %v708 = vsel %vm706, %v620, 0
  %v711 = vsel %vm706, %v621, 0
  %713 = vmatprep.subr.bf16.mxu0 0
  %714 = vmatpush1.bf16.msra.mxu0 0
  %715 = vmatprep.subr.bf16.mxu0 %v691
  %716 = vmatpush1.bf16.msra.mxu0 %v690
  %717 = vmatprep.subr.bf16.mxu0 %v689
  %718 = vmatpush1.bf16.msra.mxu0 %v688
  %719 = vmatprep.subr.bf16.mxu0 %v687
  %720 = vmatpush1.bf16.msra.mxu0 %v686
  %721 = vmatprep.subr.bf16.mxu0 %v685
  %722 = vmatpush1.bf16.msra.mxu0 %v684
  %723 = vmatprep.subr.bf16.mxu0 %v683
  %724 = vmatpush1.bf16.msra.mxu0 %v682
  %725 = vmatprep.subr.bf16.mxu0 %v681
  %726 = vmatpush1.bf16.msra.mxu0 %v680
  %727 = vmatprep.subr.bf16.mxu0 %v679
  %728 = vmatpush1.bf16.msra.mxu0 %v678
  %729 = vmatprep.subr.bf16.mxu0 0
  %730 = vmatpush2.bf16.msra.mxu0 0
  %731 = vmatprep.subr.bf16.mxu0 0
  %732 = vmatpush2.bf16.msra.mxu0 0
  %733 = vmatprep.subr.bf16.mxu0 0
  %734 = vmatpush2.bf16.msra.mxu0 0
  %735 = vmatprep.subr.bf16.mxu0 0
  %736 = vmatpush2.bf16.msra.mxu0 0
  %737 = vmatprep.subr.bf16.mxu0 0
  %738 = vmatpush2.bf16.msra.mxu0 0
  %739 = vmatprep.subr.bf16.mxu0 0
  %740 = vmatpush2.bf16.msra.mxu0 0
  %741 = vmatprep.subr.bf16.mxu0 0
  %742 = vmatpush2.bf16.msra.mxu0 0
  %743 = vmatprep.subr.bf16.mxu0 0
  %744 = vmatpush2.bf16.msra.mxu0 0
  %745 = vmatprep.mubr.bf16.mxu0 0
  %746 = vmatmul.mubr.bf16.gmra.mxu0 %v708
  %v747 = vpop.f32.mrf.mxu0
  %v748 = vadd.f32 0.0, %v747
  %v749 = vpop.f32.mrf.mxu0
  %v750 = vadd.f32 0.0, %v749
  %v751 = vpop.f32.mrf.mxu0
  %v752 = vadd.f32 0.0, %v751
  %v753 = vpop.f32.mrf.mxu0
  %v754 = vadd.f32 0.0, %v753
  %755 = vmatprep.mubr.bf16.mxu0 0
  %756 = vmatmul.mubr.bf16.gmra.mxu0 %v711
  %v757 = vpop.f32.mrf.mxu0
  %v758 = vadd.f32 0.0, %v757
  %v759 = vpop.f32.mrf.mxu0
  %v760 = vadd.f32 0.0, %v759
  %v761 = vpop.f32.mrf.mxu0
  %v762 = vadd.f32 0.0, %v761
  %v763 = vpop.f32.mrf.mxu0
  %v764 = vadd.f32 0.0, %v763
  %765 = vdwg.mxu0
  %766 = vst [vmem:[%s4] sm:$0xff] %v748
  %767 = vst [vmem:[%s4 + $0x8] sm:$0xff] %v750
  %768 = vst [vmem:[%s4 + $0x10] sm:$0xff] %v752
  %769 = vst [vmem:[%s4 + $0x18] sm:$0xff] %v754
  %770 = vst [vmem:[%s4 + $0x20] sm:$0xff] %v758
  %771 = vst [vmem:[%s4 + $0x28] sm:$0xff] %v760
  %772 = vst [vmem:[%s4 + $0x30] sm:$0xff] %v762
  %773 = vst [vmem:[%s4 + $0x38] sm:$0xff] %v764
  // Predicated region
  $region18: #{_lambda_.1} parent=0 // pred_check
    _
  $region19: #{_lambda_.1} parent=0 // pred_check_branch
    %775 = sbr.rel (0) target = $region21
  $region20: #{_lambda_.1} parent=0 // pred_region
    _
  $region21: #{_lambda_.1} parent=0 // pred_fallthru
    _
  // Predicated region
  $region22: #{_lambda_.1} parent=0 // pred_check
    _
  $region23: #{_lambda_.1} parent=0 // pred_check_branch
    %777 = sbr.rel (0) target = $region25
  $region24: #{_lambda_.1} parent=0 // pred_region
    _
  $region25: #{_lambda_.1} parent=0 // pred_fallthru
    _

</llo_original>
